<compile_context>
chip_gen: v6e
topology: v6e:2x2x1
jax: 0.10.0
libtpu: 0.0.40
codegen_flags: <defaults>
</compile_context>

<pallas_src>
import functools

import jax
import jax.numpy as jnp
from jax.experimental import pallas as pl
from jax.experimental.pallas import tpu as pltpu

DROPOUT_P = 1.0          # nn.Dropout(1.0)
SCALE = 100.0            # the .div(0.01)

# Whole arrays resident in VMEM, no blocking (footprint << VMEM on v5e/v6e/v7x).
_VMEM_SPEC = pl.BlockSpec(memory_space=pltpu.MemorySpace.VMEM)


def _fused_attn_kernel(packed_ref, o_ref, *, Lq, D, Lk, Dout):
    """Single-invocation fused kernel: scores -> softmax -> weighted sum.

    `packed_ref` holds [x1 ; x2^T ; x3] concatenated along the row axis and
    zero-padded on the lane axis to a common width (one merged input DMA).
    """
    data = packed_ref[...]                              # (B, Lq+D+Lk, W) f32

    q = data[:, 0:Lq, 0:D]                              # (B, Lq, D)
    kT = data[:, Lq:Lq + D, 0:Lk]                       # (B, D,  Lk)  (= x2^T)
    v = data[:, Lq + D:Lq + D + Lk, 0:Dout]             # (B, Lk, Dout)

    # v1 = x1 @ x2^T ; v2 = v1 / 0.01
    # Contraction over D (=3) done on the VPU as unrolled rank-1 updates:
    # (B, Lq, 1) * (B, 1, Lk) -> (B, Lq, Lk).  No MXU, no in-kernel transpose.
    scores = q[:, :, 0:1] * kT[:, 0:1, :]
    for d in range(1, D):
        scores = scores + q[:, :, d:d + 1] * kT[:, d:d + 1, :]
    scores = scores * SCALE                             # (B, Lq, Lk)

    # v3 = softmax(v2, dim=-1): numerically stable, exact divide.
    m = jnp.max(scores, axis=-1, keepdims=True)
    e = jnp.exp(scores - m)
    denom = jnp.sum(e, axis=-1, keepdims=True)
    probs = e / denom                                   # (B, Lq, Lk)

    # v4 = dropout(v3): identity on this path (eval mode / p == 0); the
    # training p == 1.0 case is folded to zeros in the wrapper.

    # v5 = v4 @ x3: contraction over Lk (=6), again unrolled VPU rank-1 updates
    # (B, Lq, 1) * (B, 1, Dout) -> (B, Lq, Dout).
    out = probs[:, :, 0:1] * v[:, 0:1, :]
    for k_idx in range(1, Lk):
        out = out + probs[:, :, k_idx:k_idx + 1] * v[:, k_idx:k_idx + 1, :]

    o_ref[...] = out.astype(o_ref.dtype)


def model_forward(x1, x2, x3, *, training=True, dropout_p=DROPOUT_P):
    B, Lq, D = x1.shape
    Bk, Lk, Dk = x2.shape
    Bv, Lv, Dout = x3.shape
    assert B == Bk == Bv and D == Dk and Lk == Lv

    if training and dropout_p >= 1.0:
        # PyTorch semantics: Dropout(p=1.0) in training mode zeros the softmax,
        # so v5 = 0 @ x3 == 0.  Return a constant directly -- launching a
        # kernel to store 320 B would be pure dispatch/DMA overhead.
        return jnp.zeros((B, Lq, Dout), dtype=jnp.float32)

    if training and dropout_p > 0.0:
        # TODO(synk): stochastic dropout mask via pltpu.prng_random_bits for
        # training-mode 0 < p < 1; not needed for this module (p == 1.0).
        raise NotImplementedError(
            "training-mode dropout with 0 < p < 1 is not implemented")

    # Eval / p == 0 path: one fused kernel, whole problem in one invocation.
    # Merge the three sub-KB inputs into a single DMA: pad last dims to a
    # common width, pre-transpose x2, and concatenate along the row axis.
    W = max(D, Lk, Dout)
    x2_t = jnp.swapaxes(x2, -1, -2)                     # (B, D, Lk) == x2^T
    packed = jnp.concatenate(
        [
            jnp.pad(x1, ((0, 0), (0, 0), (0, W - D))),      # rows [0, Lq)
            jnp.pad(x2_t, ((0, 0), (0, 0), (0, W - Lk))),   # rows [Lq, Lq+D)
            jnp.pad(x3, ((0, 0), (0, 0), (0, W - Dout))),   # rows [Lq+D, Lq+D+Lk)
        ],
        axis=1,
    ).astype(jnp.float32)                               # (B, Lq+D+Lk, W)

    kernel = functools.partial(_fused_attn_kernel, Lq=Lq, D=D, Lk=Lk, Dout=Dout)
    return pl.pallas_call(
        kernel,
        out_shape=jax.ShapeDtypeStruct((B, Lq, Dout), jnp.float32),
        in_specs=[_VMEM_SPEC],
        out_specs=_VMEM_SPEC,
    )(packed)


def _reference_eval(x1, x2, x3):
    v1 = jnp.matmul(x1, jnp.swapaxes(x2, -1, -2))
    v2 = v1 / 0.01
    v3 = jax.nn.softmax(v2, axis=-1)
    return jnp.matmul(v3, x3)


if __name__ == "__main__":
    key = jax.random.PRNGKey(0)
    k1, k2, k3 = jax.random.split(key, 3)
    B, Lq, D, Lk, Dout = 2, 5, 3, 6, 8
    x1 = jax.random.normal(k1, (B, Lq, D), dtype=jnp.float32)
    # (B, Lk, D) so that x2^T = (B, D, Lk) and matmul(x1, x2^T) is valid.
    x2 = jax.random.normal(k2, (B, Lk, D), dtype=jnp.float32)
    x3 = jax.random.normal(k3, (B, Lk, Dout), dtype=jnp.float32)

    # Module semantics (training mode, p = 1.0): output is identically zero.
    out_train = jax.block_until_ready(model_forward(x1, x2, x3, training=True))
    assert out_train.shape == (B, Lq, Dout), out_train.shape
    assert bool(jnp.all(out_train == 0.0)), "training-mode output must be all zeros"

    # Exercise the fused Pallas kernel (non-degenerate / eval path).
    out_eval = jax.block_until_ready(model_forward(x1, x2, x3, training=False))
    ref = _reference_eval(x1, x2, x3)
    assert out_eval.shape == (B, Lq, Dout), out_eval.shape
    assert jnp.allclose(out_eval, ref, atol=5e-4, rtol=5e-4), "mismatch vs reference"

    print("KERNEL_OK")
</pallas_src>

<mosaic_0001>
module attributes {stable_mosaic.version = 11 : i64} {
  func.func @_fused_attn_kernel(%arg0: memref<2x14x8xf32, #tpu.memory_space<vmem>>, %arg1: memref<2x5x8xf32, #tpu.memory_space<vmem>>) attributes {dimension_semantics = [], scalar_prefetch = 0 : i64, scratch_operands = 0 : i64, tpu.core_type = #tpu.core_type<tc>} {
    %c0 = arith.constant 0 : index
    %c0_0 = arith.constant 0 : index
    %c0_1 = arith.constant 0 : index
    %0 = vector.load %arg0[%c0, %c0_0, %c0_1] : memref<2x14x8xf32, #tpu.memory_space<vmem>>, vector<2x14x8xf32>
    %1 = vector.extract_strided_slice %0 {offsets = [0, 0, 0], sizes = [2, 5, 3], strides = [1, 1, 1]} : vector<2x14x8xf32> to vector<2x5x3xf32>
    %2 = vector.extract_strided_slice %0 {offsets = [0, 5, 0], sizes = [2, 3, 6], strides = [1, 1, 1]} : vector<2x14x8xf32> to vector<2x3x6xf32>
    %3 = vector.extract_strided_slice %0 {offsets = [0, 8, 0], sizes = [2, 6, 8], strides = [1, 1, 1]} : vector<2x14x8xf32> to vector<2x6x8xf32>
    %4 = vector.extract_strided_slice %1 {offsets = [0, 0, 0], sizes = [2, 5, 1], strides = [1, 1, 1]} : vector<2x5x3xf32> to vector<2x5x1xf32>
    %5 = vector.extract_strided_slice %2 {offsets = [0, 0, 0], sizes = [2, 1, 6], strides = [1, 1, 1]} : vector<2x3x6xf32> to vector<2x1x6xf32>
    %6 = vector.broadcast %4 : vector<2x5x1xf32> to vector<2x5x6xf32>
    %7 = vector.broadcast %5 : vector<2x1x6xf32> to vector<2x5x6xf32>
    %8 = arith.mulf %6, %7 : vector<2x5x6xf32>
    %9 = vector.extract_strided_slice %1 {offsets = [0, 0, 1], sizes = [2, 5, 1], strides = [1, 1, 1]} : vector<2x5x3xf32> to vector<2x5x1xf32>
    %10 = vector.extract_strided_slice %2 {offsets = [0, 1, 0], sizes = [2, 1, 6], strides = [1, 1, 1]} : vector<2x3x6xf32> to vector<2x1x6xf32>
    %11 = vector.broadcast %9 : vector<2x5x1xf32> to vector<2x5x6xf32>
    %12 = vector.broadcast %10 : vector<2x1x6xf32> to vector<2x5x6xf32>
    %13 = arith.mulf %11, %12 : vector<2x5x6xf32>
    %14 = arith.addf %8, %13 : vector<2x5x6xf32>
    %15 = vector.extract_strided_slice %1 {offsets = [0, 0, 2], sizes = [2, 5, 1], strides = [1, 1, 1]} : vector<2x5x3xf32> to vector<2x5x1xf32>
    %16 = vector.extract_strided_slice %2 {offsets = [0, 2, 0], sizes = [2, 1, 6], strides = [1, 1, 1]} : vector<2x3x6xf32> to vector<2x1x6xf32>
    %17 = vector.broadcast %15 : vector<2x5x1xf32> to vector<2x5x6xf32>
    %18 = vector.broadcast %16 : vector<2x1x6xf32> to vector<2x5x6xf32>
    %19 = arith.mulf %17, %18 : vector<2x5x6xf32>
    %20 = arith.addf %14, %19 : vector<2x5x6xf32>
    %cst = arith.constant 1.000000e+02 : f32
    %21 = vector.broadcast %cst : f32 to vector<2x5x6xf32>
    %22 = arith.mulf %20, %21 : vector<2x5x6xf32>
    %cst_2 = arith.constant dense<0xFF800000> : vector<2x5xf32>
    %23 = vector.multi_reduction <maximumf>, %22, %cst_2 [2] : vector<2x5x6xf32> to vector<2x5xf32>
    %24 = vector.shape_cast %23 : vector<2x5xf32> to vector<2x5x1xf32>
    %25 = vector.broadcast %24 : vector<2x5x1xf32> to vector<2x5x6xf32>
    %26 = arith.subf %22, %25 : vector<2x5x6xf32>
    %27 = math.exp %26 : vector<2x5x6xf32>
    %cst_3 = arith.constant dense<0.000000e+00> : vector<2x5xf32>
    %28 = vector.multi_reduction <add>, %27, %cst_3 [2] : vector<2x5x6xf32> to vector<2x5xf32>
    %29 = vector.shape_cast %28 : vector<2x5xf32> to vector<2x5x1xf32>
    %30 = vector.broadcast %29 : vector<2x5x1xf32> to vector<2x5x6xf32>
    %31 = arith.divf %27, %30 : vector<2x5x6xf32>
    %32 = vector.extract_strided_slice %31 {offsets = [0, 0, 0], sizes = [2, 5, 1], strides = [1, 1, 1]} : vector<2x5x6xf32> to vector<2x5x1xf32>
    %33 = vector.extract_strided_slice %3 {offsets = [0, 0, 0], sizes = [2, 1, 8], strides = [1, 1, 1]} : vector<2x6x8xf32> to vector<2x1x8xf32>
    %34 = vector.broadcast %32 : vector<2x5x1xf32> to vector<2x5x8xf32>
    %35 = vector.broadcast %33 : vector<2x1x8xf32> to vector<2x5x8xf32>
    %36 = arith.mulf %34, %35 : vector<2x5x8xf32>
    %37 = vector.extract_strided_slice %31 {offsets = [0, 0, 1], sizes = [2, 5, 1], strides = [1, 1, 1]} : vector<2x5x6xf32> to vector<2x5x1xf32>
    %38 = vector.extract_strided_slice %3 {offsets = [0, 1, 0], sizes = [2, 1, 8], strides = [1, 1, 1]} : vector<2x6x8xf32> to vector<2x1x8xf32>
    %39 = vector.broadcast %37 : vector<2x5x1xf32> to vector<2x5x8xf32>
    %40 = vector.broadcast %38 : vector<2x1x8xf32> to vector<2x5x8xf32>
    %41 = arith.mulf %39, %40 : vector<2x5x8xf32>
    %42 = arith.addf %36, %41 : vector<2x5x8xf32>
    %43 = vector.extract_strided_slice %31 {offsets = [0, 0, 2], sizes = [2, 5, 1], strides = [1, 1, 1]} : vector<2x5x6xf32> to vector<2x5x1xf32>
    %44 = vector.extract_strided_slice %3 {offsets = [0, 2, 0], sizes = [2, 1, 8], strides = [1, 1, 1]} : vector<2x6x8xf32> to vector<2x1x8xf32>
    %45 = vector.broadcast %43 : vector<2x5x1xf32> to vector<2x5x8xf32>
    %46 = vector.broadcast %44 : vector<2x1x8xf32> to vector<2x5x8xf32>
    %47 = arith.mulf %45, %46 : vector<2x5x8xf32>
    %48 = arith.addf %42, %47 : vector<2x5x8xf32>
    %49 = vector.extract_strided_slice %31 {offsets = [0, 0, 3], sizes = [2, 5, 1], strides = [1, 1, 1]} : vector<2x5x6xf32> to vector<2x5x1xf32>
    %50 = vector.extract_strided_slice %3 {offsets = [0, 3, 0], sizes = [2, 1, 8], strides = [1, 1, 1]} : vector<2x6x8xf32> to vector<2x1x8xf32>
    %51 = vector.broadcast %49 : vector<2x5x1xf32> to vector<2x5x8xf32>
    %52 = vector.broadcast %50 : vector<2x1x8xf32> to vector<2x5x8xf32>
    %53 = arith.mulf %51, %52 : vector<2x5x8xf32>
    %54 = arith.addf %48, %53 : vector<2x5x8xf32>
    %55 = vector.extract_strided_slice %31 {offsets = [0, 0, 4], sizes = [2, 5, 1], strides = [1, 1, 1]} : vector<2x5x6xf32> to vector<2x5x1xf32>
    %56 = vector.extract_strided_slice %3 {offsets = [0, 4, 0], sizes = [2, 1, 8], strides = [1, 1, 1]} : vector<2x6x8xf32> to vector<2x1x8xf32>
    %57 = vector.broadcast %55 : vector<2x5x1xf32> to vector<2x5x8xf32>
    %58 = vector.broadcast %56 : vector<2x1x8xf32> to vector<2x5x8xf32>
    %59 = arith.mulf %57, %58 : vector<2x5x8xf32>
    %60 = arith.addf %54, %59 : vector<2x5x8xf32>
    %61 = vector.extract_strided_slice %31 {offsets = [0, 0, 5], sizes = [2, 5, 1], strides = [1, 1, 1]} : vector<2x5x6xf32> to vector<2x5x1xf32>
    %62 = vector.extract_strided_slice %3 {offsets = [0, 5, 0], sizes = [2, 1, 8], strides = [1, 1, 1]} : vector<2x6x8xf32> to vector<2x1x8xf32>
    %63 = vector.broadcast %61 : vector<2x5x1xf32> to vector<2x5x8xf32>
    %64 = vector.broadcast %62 : vector<2x1x8xf32> to vector<2x5x8xf32>
    %65 = arith.mulf %63, %64 : vector<2x5x8xf32>
    %66 = arith.addf %60, %65 : vector<2x5x8xf32>
    %c0_4 = arith.constant 0 : index
    %c0_5 = arith.constant 0 : index
    %c0_6 = arith.constant 0 : index
    %67 = vector.load %arg1[%c0_4, %c0_5, %c0_6] : memref<2x5x8xf32, #tpu.memory_space<vmem>>, vector<2x5x8xf32>
    tpu.vector_store %arg1[%c0_4, %c0_5, %c0_6], %66 {strides = array<i32>} : memref<2x5x8xf32, #tpu.memory_space<vmem>>, vector<2x5x8xf32>,
    return
  }
}

</mosaic_0001>

<llo_original>
// kernel: tpu_custom_call.1
$region0: #{tpu_custom_call.1}
  #allocation0 [shape = 'u32[]', space=smem, size = 0x4, offset = 0x4, fixed_abs, tag = 'smem constant byte address 0x4 - core index']
  #allocation1 [shape = 'u32[144,128]{1,0:T(1,128)}', space=vmem, size = 0x12000, scoped, tag = 'internal scratch']
  %s0 = inlined_call_operand.vmem [shape: f32[2,14,8], index: 0, kind: input, shape index: {}]
  %s1 = inlined_call_operand.vmem [shape: f32[2,5,8], index: 1, kind: output, shape index: {}]
  %s2 = sld [smem:[#allocation0]]
  $region14: #{tpu_custom_call.1} parent=0
    _
  %s4 = ssub.s32 1, %s2
  %s5 = scalar_select 0, %s4, %s2
  // Predicated region
  $region2: #{tpu_custom_call.1} parent=0 // pred_check
    _
  $region3: #{tpu_custom_call.1} parent=0 // pred_check_branch
    %7 = sbr.rel (0) target = $region5
  $region4: #{tpu_custom_call.1} parent=0 // pred_region
    _
  $region5: #{tpu_custom_call.1} parent=0 // pred_fallthru
    _
  %v8 = vld [vmem:[%s0] sm:$0xff]
  %v9 = vld [vmem:[%s0 + $0x8] sm:$0x3f]
  %v10 = vld [vmem:[%s0 + $0x10] sm:$0xff]
  %v11 = vld [vmem:[%s0 + $0x18] sm:$0x3f]
  %13 = vset.pattern.permute.xlu0 0
  %14 = vperm.xlu0 %13, %v8
  %v15 = vpop.permute.xlu0 %14
  %18 = vset.pattern.permute.xlu0 0
  %19 = vperm.xlu0 %18, %v10
  %v20 = vpop.permute.xlu0 %19
  %v22 = vlaneseq
  %v23 = vshrl.u32 %v22, 7
  %v24 = vsub.s32 5, %v23
  %v25 = vrot.slane %v8, %v24
  %v26 = vlaneseq
  %v27 = vshrl.u32 %v26, 7
  %v28 = vsub.s32 5, %v27
  %v29 = vrot.slane %v10, %v28
  %v30 = vmul.f32 %v15, %v25
  %v31 = vmul.f32 %v20, %v29
  %32 = vset.pattern.permute.xlu0 1
  %33 = vperm.xlu0 %32, %v8
  %v34 = vpop.permute.xlu0 %33
  %36 = vset.pattern.permute.xlu0 1
  %37 = vperm.xlu0 %36, %v10
  %v38 = vpop.permute.xlu0 %37
  %v40 = vlaneseq
  %v41 = vshrl.u32 %v40, 7
  %v42 = vsub.s32 6, %v41
  %v43 = vrot.slane %v8, %v42
  %v44 = vlaneseq
  %v45 = vshrl.u32 %v44, 7
  %v46 = vsub.s32 6, %v45
  %v47 = vrot.slane %v10, %v46
  %v48 = vmul.f32 %v34, %v43
  %v49 = vmul.f32 %v38, %v47
  %v50 = vadd.f32 %v30, %v48
  %v51 = vadd.f32 %v31, %v49
  %52 = vset.pattern.permute.xlu0 2
  %53 = vperm.xlu0 %52, %v8
  %v54 = vpop.permute.xlu0 %53
  %56 = vset.pattern.permute.xlu0 2
  %57 = vperm.xlu0 %56, %v10
  %v58 = vpop.permute.xlu0 %57
  %v60 = vlaneseq
  %v61 = vshrl.u32 %v60, 7
  %v62 = vsub.s32 7, %v61
  %v63 = vrot.slane %v8, %v62
  %v64 = vlaneseq
  %v65 = vshrl.u32 %v64, 7
  %v66 = vsub.s32 7, %v65
  %v67 = vrot.slane %v10, %v66
  %v68 = vmul.f32 %v54, %v63
  %v69 = vmul.f32 %v58, %v67
  %v70 = vadd.f32 %v50, %v68
  %v71 = vadd.f32 %v51, %v69
  %v72 = vmul.f32 %v70, 100.0
  %v73 = vmul.f32 %v71, 100.0
  %vm74 = vcmask 45056
  %v75 = vsel %vm74, %v72, -inf
  %76 = vmax.xlane.f32.xlu0 %v75
  %v77 = vpop.xlane.xlu0 %76
  %v78 = vsel %vm74, %v73, -inf
  %79 = vmax.xlane.f32.xlu0 %v78
  %v80 = vpop.xlane.xlu0 %79
  %v81 = vsub.f32 %v72, %v77
  %v82 = vsub.f32 %v73, %v80
  %v83 = vmul.f32 %v81, 1.442695
  %v84 = vpow.pop %v83
  %v85 = vmul.f32 %v82, 1.442695
  %v86 = vpow.pop %v85
  %v87 = vsel %vm74, %v84, 0.0
  %88 = vadd.xlane.f32.xlu0 %v87
  %v89 = vpop.xlane.xlu0 %88
  %v90 = vsel %vm74, %v86, 0.0
  %91 = vadd.xlane.f32.xlu0 %v90
  %v92 = vpop.xlane.xlu0 %91
  %v93 = vrcp.pop %v89
  %v94 = vmul.f32 %v84, %v93
  %v95 = vrcp.pop %v92
  %v96 = vmul.f32 %v86, %v95
  %98 = vset.pattern.permute.xlu0 0
  %99 = vperm.xlu0 %98, %v94
  %v100 = vpop.permute.xlu0 %99
  %103 = vset.pattern.permute.xlu0 0
  %104 = vperm.xlu0 %103, %v96
  %v105 = vpop.permute.xlu0 %104
  %v107 = vlaneseq
  %v108 = vshrl.u32 %v107, 7
  %v109 = vsub.s32 0, %v108
  %v110 = vrot.slane %v9, %v109
  %v111 = vlaneseq
  %v112 = vshrl.u32 %v111, 7
  %v113 = vsub.s32 0, %v112
  %v114 = vrot.slane %v11, %v113
  %v115 = vmul.f32 %v100, %v110
  %v116 = vmul.f32 %v105, %v114
  %117 = vset.pattern.permute.xlu0 1
  %118 = vperm.xlu0 %117, %v94
  %v119 = vpop.permute.xlu0 %118
  %121 = vset.pattern.permute.xlu0 1
  %122 = vperm.xlu0 %121, %v96
  %v123 = vpop.permute.xlu0 %122
  %v125 = vlaneseq
  %v126 = vshrl.u32 %v125, 7
  %v127 = vsub.s32 1, %v126
  %v128 = vrot.slane %v9, %v127
  %v129 = vlaneseq
  %v130 = vshrl.u32 %v129, 7
  %v131 = vsub.s32 1, %v130
  %v132 = vrot.slane %v11, %v131
  %v133 = vmul.f32 %v119, %v128
  %v134 = vmul.f32 %v123, %v132
  %v135 = vadd.f32 %v115, %v133
  %v136 = vadd.f32 %v116, %v134
  %137 = vset.pattern.permute.xlu0 2
  %138 = vperm.xlu0 %137, %v94
  %v139 = vpop.permute.xlu0 %138
  %141 = vset.pattern.permute.xlu0 2
  %142 = vperm.xlu0 %141, %v96
  %v143 = vpop.permute.xlu0 %142
  %v145 = vlaneseq
  %v146 = vshrl.u32 %v145, 7
  %v147 = vsub.s32 2, %v146
  %v148 = vrot.slane %v9, %v147
  %v149 = vlaneseq
  %v150 = vshrl.u32 %v149, 7
  %v151 = vsub.s32 2, %v150
  %v152 = vrot.slane %v11, %v151
  %v153 = vmul.f32 %v139, %v148
  %v154 = vmul.f32 %v143, %v152
  %v155 = vadd.f32 %v135, %v153
  %v156 = vadd.f32 %v136, %v154
  %157 = vset.pattern.permute.xlu0 3
  %158 = vperm.xlu0 %157, %v94
  %v159 = vpop.permute.xlu0 %158
  %161 = vset.pattern.permute.xlu0 3
  %162 = vperm.xlu0 %161, %v96
  %v163 = vpop.permute.xlu0 %162
  %v165 = vlaneseq
  %v166 = vshrl.u32 %v165, 7
  %v167 = vsub.s32 3, %v166
  %v168 = vrot.slane %v9, %v167
  %v169 = vlaneseq
  %v170 = vshrl.u32 %v169, 7
  %v171 = vsub.s32 3, %v170
  %v172 = vrot.slane %v11, %v171
  %v173 = vmul.f32 %v159, %v168
  %v174 = vmul.f32 %v163, %v172
  %v175 = vadd.f32 %v155, %v173
  %v176 = vadd.f32 %v156, %v174
  %177 = vset.pattern.permute.xlu0 4
  %178 = vperm.xlu0 %177, %v94
  %v179 = vpop.permute.xlu0 %178
  %181 = vset.pattern.permute.xlu0 4
  %182 = vperm.xlu0 %181, %v96
  %v183 = vpop.permute.xlu0 %182
  %v185 = vlaneseq
  %v186 = vshrl.u32 %v185, 7
  %v187 = vsub.s32 4, %v186
  %v188 = vrot.slane %v9, %v187
  %v189 = vlaneseq
  %v190 = vshrl.u32 %v189, 7
  %v191 = vsub.s32 4, %v190
  %v192 = vrot.slane %v11, %v191
  %v193 = vmul.f32 %v179, %v188
  %v194 = vmul.f32 %v183, %v192
  %v195 = vadd.f32 %v175, %v193
  %v196 = vadd.f32 %v176, %v194
  %197 = vset.pattern.permute.xlu0 5
  %198 = vperm.xlu0 %197, %v94
  %v199 = vpop.permute.xlu0 %198
  %201 = vset.pattern.permute.xlu0 5
  %202 = vperm.xlu0 %201, %v96
  %v203 = vpop.permute.xlu0 %202
  %v205 = vlaneseq
  %v206 = vshrl.u32 %v205, 7
  %v207 = vsub.s32 5, %v206
  %v208 = vrot.slane %v9, %v207
  %v209 = vlaneseq
  %v210 = vshrl.u32 %v209, 7
  %v211 = vsub.s32 5, %v210
  %v212 = vrot.slane %v11, %v211
  %v213 = vmul.f32 %v199, %v208
  %v214 = vmul.f32 %v203, %v212
  %v215 = vadd.f32 %v195, %v213
  %v216 = vadd.f32 %v196, %v214
  %vm217 = vcmask 61440
  %218 = vst.msk [vmem:[%s1] sm:$0x1f] %vm217, %v215
  %219 = vst.msk [vmem:[%s1 + $0x8] sm:$0x1f] %vm217, %v216
  // Predicated region
  $region6: #{tpu_custom_call.1} parent=0 // pred_check
    _
  $region7: #{tpu_custom_call.1} parent=0 // pred_check_branch
    %221 = sbr.rel (0) target = $region9
  $region8: #{tpu_custom_call.1} parent=0 // pred_region
    _
  $region9: #{tpu_custom_call.1} parent=0 // pred_fallthru
    _
  // Predicated region
  $region10: #{tpu_custom_call.1} parent=0 // pred_check
    _
  $region11: #{tpu_custom_call.1} parent=0 // pred_check_branch
    %223 = sbr.rel (0) target = $region13
  $region12: #{tpu_custom_call.1} parent=0 // pred_region
    _
  $region13: #{tpu_custom_call.1} parent=0 // pred_fallthru
    _

</llo_original>
